<compile_context>
chip_gen: v7x
topology: tpu7x:2x2x1
jax: 0.10.0
libtpu: 0.0.40
codegen_flags: <defaults>
</compile_context>

<pallas_src>
import functools
import math

import jax
import jax.numpy as jnp
from jax.experimental import pallas as pl
from jax.experimental.pallas import tpu as pltpu


def _round_up(x, m):
    return ((x + m - 1) // m) * m


# ---------------------------------------------------------------------------
# Shared per-pixel CE loss (loss space; -inf sentinel for ignore pixels)
# ---------------------------------------------------------------------------
def _pixel_loss(logits_ref, labels_ref, ignore_index):
    # logits block: (1, C, TILE) in native dtype -> cast in-vreg to f32
    x = logits_ref[0].astype(jnp.float32)            # (C, TILE)
    lbl = labels_ref[0].astype(jnp.int32)            # (1, TILE)

    # numerically-stable log-sum-exp over the class (sublane) axis
    m = jnp.max(x, axis=0, keepdims=True)            # (1, TILE)
    lse = m + jnp.log(jnp.sum(jnp.exp(x - m), axis=0, keepdims=True))

    # gather gt-class logit with a compare-select (no one-hot matmul)
    cls = jax.lax.broadcasted_iota(jnp.int32, x.shape, 0)
    gt = jnp.sum(jnp.where(cls == lbl, x, 0.0), axis=0, keepdims=True)

    valid = lbl != ignore_index
    # loss = -log_softmax[gt] >= 0; ignore pixels -> -inf sentinel (never kept)
    # TODO(synk): out-of-range labels (>= C, != ignore) silently give loss = lse
    # instead of torch's error; NaN logits are silently dropped instead of
    # propagating NaN.
    return jnp.where(valid, lse - gt, -jnp.inf), valid


# ---------------------------------------------------------------------------
# Kernel 1 (hot path): fused per-(image, lane) OHEM statistics, no loss writeback
# ---------------------------------------------------------------------------
def _ce_stats_kernel(logits_ref, labels_ref, stats_ref, *, ignore_index, thr0):
    @pl.when(pl.program_id(1) == 0)
    def _():
        stats_ref[...] = jnp.zeros_like(stats_ref)

    loss, valid = _pixel_loss(logits_ref, labels_ref, ignore_index)
    kept = loss >= thr0                               # prob <= score_thresh

    # lane-wise accumulation (pure VPU adds, no per-step cross-lane reduce)
    stats_ref[0, 0:1, :] += jnp.where(kept, loss, 0.0)
    stats_ref[0, 1:2, :] += kept.astype(jnp.float32)
    stats_ref[0, 2:3, :] += valid.astype(jnp.float32)


def _ohem_stats(logits_r, labels_r, tile, ignore_index, thr0, vmem_limit):
    N, C, HW = logits_r.shape
    assert HW % tile == 0, (HW, tile)
    grid = (N, HW // tile)
    kern = functools.partial(_ce_stats_kernel, ignore_index=ignore_index, thr0=thr0)
    return pl.pallas_call(
        kern,
        out_shape=jax.ShapeDtypeStruct((N, 3, tile), jnp.float32),
        grid=grid,
        in_specs=[pl.BlockSpec((1, C, tile), lambda n, t: (n, 0, t)),
                  pl.BlockSpec((1, 1, tile), lambda n, t: (n, 0, t))],
        out_specs=pl.BlockSpec((1, 3, tile), lambda n, t: (n, 0, 0)),
        compiler_params=pltpu.CompilerParams(
            dimension_semantics=("parallel", "arbitrary"),
            vmem_limit_bytes=vmem_limit),
    )(logits_r, labels_r)


# ---------------------------------------------------------------------------
# Kernel 2 (rare hard-mining path): materialize per-pixel losses
# ---------------------------------------------------------------------------
def _ce_loss_kernel(logits_ref, labels_ref, loss_ref, *, ignore_index):
    loss, _ = _pixel_loss(logits_ref, labels_ref, ignore_index)
    loss_ref[0] = loss


def _per_pixel_loss(logits_r, labels_r, tile, ignore_index, vmem_limit):
    N, C, HW = logits_r.shape
    assert HW % tile == 0, (HW, tile)
    grid = (N, HW // tile)
    kern = functools.partial(_ce_loss_kernel, ignore_index=ignore_index)
    return pl.pallas_call(
        kern,
        out_shape=jax.ShapeDtypeStruct((N, 1, HW), jnp.float32),
        grid=grid,
        in_specs=[pl.BlockSpec((1, C, tile), lambda n, t: (n, 0, t)),
                  pl.BlockSpec((1, 1, tile), lambda n, t: (n, 0, t))],
        out_specs=pl.BlockSpec((1, 1, tile), lambda n, t: (n, 0, t)),
        compiler_params=pltpu.CompilerParams(
            dimension_semantics=("parallel", "parallel"),
            vmem_limit_bytes=vmem_limit),
    )(logits_r, labels_r)


# ---------------------------------------------------------------------------
# VMEM budget & tiling (dtype-aware padding, generation-aware budget)
# ---------------------------------------------------------------------------
def _sublane_pad(rows, itemsize):
    packing = max(4 // max(itemsize, 1), 1)   # f32:1, bf16:2, int8/u8:4
    mult = 8 * packing
    return _round_up(rows, mult)


def _per_lane_bytes(c, logit_itemsize, label_itemsize):
    c_pad = _sublane_pad(c, logit_itemsize)
    lbl_rows = _sublane_pad(1, label_itemsize)
    stats_rows = 8                            # (3, tile) f32 pads to 8 sublanes
    return (2 * c_pad * logit_itemsize        # double-buffered logits
            + 2 * lbl_rows * label_itemsize   # double-buffered labels
            + 2 * stats_rows * 4)             # stats / loss f32 rows


def _vmem_budget():
    try:
        cap = int(pltpu.get_tpu_info().vmem_capacity_bytes)
    except Exception:
        cap = 64 * 1024 * 1024                # conservative fallback (v7x-sized)
    budget = max(min(cap // 4, 24 * 1024 * 1024), 4 * 1024 * 1024)
    return cap, budget


def _choose_tile(hw, per_lane, budget):
    """Pick a multiple-of-128 lane tile under the VMEM budget.

    Prefers a tile that divides HW exactly (no padding copy); otherwise pads HW
    up to a multiple of a moderate tile (padding waste bounded to ~6%)."""
    hw128 = max(128, _round_up(hw, 128))
    target = max((budget // per_lane) // 128 * 128, 128)
    target = min(target, hw128)
    if hw >= 128 and hw % 128 == 0:
        t = target
        while hw % t:
            t -= 128
        if t >= min(512, target):
            return t, hw                      # exact divisor, no padding
    cap = max(128, (hw // 16) // 128 * 128)   # bound padding waste
    tile = max(128, min(target, cap))
    return tile, _round_up(hw, tile)


# ---------------------------------------------------------------------------
# Wrapper: layout, OHEM threshold selection, final mean
# ---------------------------------------------------------------------------
@functools.partial(jax.jit,
                   static_argnames=("score_thresh", "n_min", "ignore_index", "tile_hw"))
def ohem_ce_loss(logits, labels, score_thresh=0.7, n_min=None,
                 ignore_index=255, tile_hw=None):
    """logits: (N, C, H, W); labels: (N, H, W) int. score_thresh/n_min/ignore static."""
    N, C, H, W = logits.shape
    HW = H * W
    P = N * HW
    n_min = P // 16 if n_min is None else int(n_min)

    if not jnp.issubdtype(labels.dtype, jnp.integer):
        labels = labels.astype(jnp.int32)

    logit_isz = jnp.dtype(logits.dtype).itemsize
    label_isz = jnp.dtype(labels.dtype).itemsize
    per_lane = _per_lane_bytes(C, logit_isz, label_isz)
    cap, budget = _vmem_budget()
    if tile_hw is None:
        tile, hw_pad = _choose_tile(HW, per_lane, budget)
    else:
        tile = int(tile_hw)
        assert tile % 128 == 0, tile
        hw_pad = _round_up(HW, tile)
    vmem_limit = int(min(cap * 3 // 4, max(per_lane * tile + (4 << 20), 16 << 20)))

    # contiguous reshapes only: no HBM transpose, no dtype change of logits
    logits_r = logits.reshape(N, C, HW)
    labels_r = labels.reshape(N, 1, HW)
    if hw_pad != HW:
        logits_r = jnp.pad(logits_r, ((0, 0), (0, 0), (0, hw_pad - HW)))
        labels_r = jnp.pad(labels_r, ((0, 0), (0, 0), (0, hw_pad - HW)),
                           constant_values=ignore_index)

    # threshold in loss space:  prob <= score_thresh  <=>  loss >= -log(score_thresh)
    thr0 = float(-math.log(float(score_thresh)))

    # hot kernel: fused stats, no per-pixel loss written to HBM
    stats = _ohem_stats(logits_r, labels_r, tile, ignore_index, thr0, vmem_limit)
    sum0 = jnp.sum(stats[:, 0, :])                               # kept-loss sum @ thr0
    cnt0 = jnp.sum(stats[:, 1, :].astype(jnp.int32))             # kept count  @ thr0
    num_valid = jnp.sum(stats[:, 2, :].astype(jnp.int32))        # valid pixels
    min_needed = jnp.minimum(jnp.int32(n_min), num_valid)

    def _simple(_):
        # enough hard pixels already above score_thresh: threshold == score_thresh,
        # masked mean was already computed by the fused stats pass.
        return sum0 / cnt0.astype(jnp.float32)

    def _hard(_):
        # rare: fewer than n_min pixels above score_thresh -> keep the n_min hardest
        # (k-th smallest prob == k-th largest loss). Recompute per-pixel losses here
        # only (the hot path never materializes them).
        loss3 = _per_pixel_loss(logits_r, labels_r, tile, ignore_index, vmem_limit)
        loss_flat = loss3.reshape(-1)
        k = jnp.maximum(min_needed, 1)

        # Exact k-th largest loss via monotone binary search over f32 bit patterns
        # (losses are >= 0, so int32 bit order == value order): 31 streaming count
        # passes instead of lax.top_k with k = P/16.
        # TODO(synk): fuse the counts into one multi-threshold Pallas histogram pass.
        def count_ge(bits):
            t = jax.lax.bitcast_convert_type(bits, jnp.float32)
            return jnp.sum((loss_flat >= t).astype(jnp.int32))

        def body(_, lohi):
            lo, hi = lohi                      # lo feasible (count>=k), hi infeasible
            mid = lo + (hi - lo) // 2
            ok = count_ge(mid) >= k
            return (jnp.where(ok, mid, lo), jnp.where(ok, hi, mid))

        lo0 = jnp.int32(0)                     # +0.0  -> count == num_valid >= k
        hi0 = jnp.int32(0x7F800000)            # +inf  -> count == 0 < k
        lo, _unused = jax.lax.fori_loop(0, 31, body, (lo0, hi0))
        kth = jax.lax.bitcast_convert_type(lo, jnp.float32)
        thr = jnp.minimum(jnp.float32(thr0), kth)

        kept = loss_flat >= thr                # -inf sentinel never kept
        s = jnp.sum(jnp.where(kept, loss_flat, 0.0))
        c = jnp.sum(kept.astype(jnp.float32))
        return s / c

    use_simple = (cnt0 >= jnp.maximum(min_needed, 1)) | (num_valid == 0)
    return jax.lax.cond(use_simple, _simple, _hard, None)   # nan if nothing kept


# ---------------------------------------------------------------------------
# Pure-JAX reference for validation (prob space, explicit sort — test only)
# ---------------------------------------------------------------------------
def ref_ohem_ce_loss(logits, labels, score_thresh, n_min, ignore_index):
    N, C, H, W = logits.shape
    lg = jnp.transpose(logits, (0, 2, 3, 1)).reshape(-1, C).astype(jnp.float32)
    lb = labels.reshape(-1).astype(jnp.int32)
    logp = jax.nn.log_softmax(lg, axis=-1)
    valid = lb != ignore_index
    lb_safe = jnp.where(valid, lb, 0)
    gt_logp = jnp.take_along_axis(logp, lb_safe[:, None], axis=1)[:, 0]
    prob = jnp.where(valid, jnp.exp(gt_logp), 2.0)      # invalid pixels sort last
    num_valid = jnp.sum(valid.astype(jnp.int32))
    k = jnp.clip(jnp.minimum(jnp.int32(n_min), num_valid) - 1, 0, lb.shape[0] - 1)
    kth = jnp.sort(prob)[k]
    thresh = jnp.maximum(jnp.float32(score_thresh), kth)
    kept = valid & (prob <= thresh)
    return jnp.sum(jnp.where(kept, -gt_logp, 0.0)) / jnp.sum(kept.astype(jnp.float32))


if __name__ == "__main__":
    key = jax.random.PRNGKey(0)
    k1, k2, k3 = jax.random.split(key, 3)

    N, C, H, W = 2, 4, 16, 16
    IGNORE = 255
    P = N * H * W
    n_min = P // 16

    logits = jax.random.normal(k1, (N, C, H, W), dtype=jnp.float32) * 3.0
    labels = jax.random.randint(k2, (N, H, W), 0, C, dtype=jnp.int32)
    ignore_mask = jax.random.uniform(k3, (N, H, W)) < 0.1
    labels = jnp.where(ignore_mask, IGNORE, labels)

    tests = [
        ("thresh-path", 0.7, jnp.float32),    # common case: threshold == score_thresh
        ("hard-path", 1e-6, jnp.float32),     # hard-mining case: k-th largest loss
        ("bf16-input", 0.7, jnp.bfloat16),    # native-dtype logits, cast inside kernel
    ]
    for name, st, dt in tests:
        out = ohem_ce_loss(logits.astype(dt), labels, score_thresh=st,
                           n_min=None, ignore_index=IGNORE, tile_hw=128)
        out = jax.block_until_ready(out)
        ref = ref_ohem_ce_loss(logits.astype(dt), labels, st, n_min, IGNORE)
        assert bool(jnp.isfinite(out)), f"{name}: non-finite loss {out}"
        tol = 1e-3 + 1e-3 * abs(float(ref))
        assert abs(float(out) - float(ref)) < tol, (name, float(out), float(ref))

    # also exercise the automatic tile selection / VMEM-budget path
    out = ohem_ce_loss(logits, labels, score_thresh=0.7, ignore_index=IGNORE)
    jax.block_until_ready(out)

    print("KERNEL_OK")
</pallas_src>

<mosaic_0001>
module attributes {stable_mosaic.version = 11 : i64} {
  func.func @_ce_stats_kernel(%arg0: i32, %arg1: i32, %arg2: memref<1x4x128xf32, #tpu.memory_space<vmem>>, %arg3: memref<1x1x128xi32, #tpu.memory_space<vmem>>, %arg4: memref<1x3x128xf32, #tpu.memory_space<vmem>>) attributes {dimension_semantics = [#tpu.dimension_semantics<parallel>, #tpu.dimension_semantics<arbitrary>], iteration_bounds = array<i64: 2, 2>, scalar_prefetch = 0 : i64, scratch_operands = 0 : i64, tpu.core_type = #tpu.core_type<tc>, window_params = [{transform_indices = @transform_0, window_bounds = array<i64: 1, 4, 128>}, {transform_indices = @transform_1, window_bounds = array<i64: 1, 1, 128>}, {transform_indices = @transform_2, window_bounds = array<i64: 1, 3, 128>}]} {
    %c0_i32 = arith.constant 0 : i32
    %0 = arith.cmpi eq, %arg1, %c0_i32 : i32
    %1 = arith.extui %0 : i1 to i32
    %c0_i32_0 = arith.constant 0 : i32
    %2 = arith.cmpi ne, %1, %c0_i32_0 : i32
    scf.if %2 {
      %cst_28 = arith.constant 0.000000e+00 : f32
      %54 = vector.broadcast %cst_28 : f32 to vector<1x3x128xf32>
      %c0_29 = arith.constant 0 : index
      %c0_30 = arith.constant 0 : index
      %c0_31 = arith.constant 0 : index
      %55 = vector.load %arg4[%c0_29, %c0_30, %c0_31] : memref<1x3x128xf32, #tpu.memory_space<vmem>>, vector<1x3x128xf32>
      tpu.vector_store %arg4[%c0_29, %c0_30, %c0_31], %54 {strides = array<i32>} : memref<1x3x128xf32, #tpu.memory_space<vmem>>, vector<1x3x128xf32>,
    } else {
    }
    %c0 = arith.constant 0 : index
    %c0_1 = arith.constant 0 : index
    %c0_2 = arith.constant 0 : index
    %3 = vector.load %arg2[%c0, %c0_1, %c0_2] : memref<1x4x128xf32, #tpu.memory_space<vmem>>, vector<1x4x128xf32>
    %4 = vector.shape_cast %3 : vector<1x4x128xf32> to vector<4x128xf32>
    %c0_3 = arith.constant 0 : index
    %c0_4 = arith.constant 0 : index
    %c0_5 = arith.constant 0 : index
    %5 = vector.load %arg3[%c0_3, %c0_4, %c0_5] : memref<1x1x128xi32, #tpu.memory_space<vmem>>, vector<1x1x128xi32>
    %6 = vector.shape_cast %5 : vector<1x1x128xi32> to vector<1x128xi32>
    %cst = arith.constant dense<0xFF800000> : vector<128xf32>
    %7 = vector.multi_reduction <maximumf>, %4, %cst [0] : vector<4x128xf32> to vector<128xf32>
    %8 = vector.shape_cast %7 : vector<128xf32> to vector<1x128xf32>
    %9 = vector.broadcast %8 : vector<1x128xf32> to vector<4x128xf32>
    %10 = arith.subf %4, %9 : vector<4x128xf32>
    %11 = math.exp %10 : vector<4x128xf32>
    %cst_6 = arith.constant dense<0.000000e+00> : vector<128xf32>
    %12 = vector.multi_reduction <add>, %11, %cst_6 [0] : vector<4x128xf32> to vector<128xf32>
    %13 = vector.shape_cast %12 : vector<128xf32> to vector<1x128xf32>
    %14 = math.log %13 : vector<1x128xf32>
    %15 = arith.addf %8, %14 : vector<1x128xf32>
    %16 = tpu.iota {dimensions = array<i32: 0>} : vector<4x128xi32>
    %17 = vector.broadcast %6 : vector<1x128xi32> to vector<4x128xi32>
    %18 = arith.cmpi eq, %16, %17 : vector<4x128xi32>
    %cst_7 = arith.constant 0.000000e+00 : f32
    %19 = vector.broadcast %cst_7 : f32 to vector<4x128xf32>
    %20 = arith.select %18, %4, %19 : vector<4x128xi1>, vector<4x128xf32>
    %cst_8 = arith.constant dense<0.000000e+00> : vector<128xf32>
    %21 = vector.multi_reduction <add>, %20, %cst_8 [0] : vector<4x128xf32> to vector<128xf32>
    %22 = vector.shape_cast %21 : vector<128xf32> to vector<1x128xf32>
    %c255_i32 = arith.constant 255 : i32
    %23 = vector.broadcast %c255_i32 : i32 to vector<1x128xi32>
    %24 = arith.cmpi ne, %6, %23 : vector<1x128xi32>
    %25 = arith.subf %15, %22 : vector<1x128xf32>
    %cst_9 = arith.constant 0xFF800000 : f32
    %26 = vector.broadcast %cst_9 : f32 to vector<1x128xf32>
    %27 = arith.select %24, %25, %26 : vector<1x128xi1>, vector<1x128xf32>
    %cst_10 = arith.constant 0.356674939 : f32
    %28 = vector.broadcast %cst_10 : f32 to vector<1x128xf32>
    %29 = arith.cmpf oge, %27, %28 : vector<1x128xf32>
    %c0_11 = arith.constant 0 : index
    %c0_12 = arith.constant 0 : index
    %c0_13 = arith.constant 0 : index
    %30 = vector.load %arg4[%c0_11, %c0_12, %c0_13] : memref<1x3x128xf32, #tpu.memory_space<vmem>>, vector<1x1x128xf32>
    %31 = vector.shape_cast %30 : vector<1x1x128xf32> to vector<1x128xf32>
    %cst_14 = arith.constant 0.000000e+00 : f32
    %32 = vector.broadcast %cst_14 : f32 to vector<1x128xf32>
    %33 = arith.select %29, %27, %32 : vector<1x128xi1>, vector<1x128xf32>
    %34 = arith.addf %31, %33 : vector<1x128xf32>
    %c0_15 = arith.constant 0 : index
    %c0_16 = arith.constant 0 : index
    %c0_17 = arith.constant 0 : index
    %35 = vector.load %arg4[%c0_15, %c0_16, %c0_17] : memref<1x3x128xf32, #tpu.memory_space<vmem>>, vector<1x1x128xf32>
    %36 = vector.shape_cast %35 : vector<1x1x128xf32> to vector<1x128xf32>
    %37 = vector.shape_cast %34 : vector<1x128xf32> to vector<1x1x128xf32>
    tpu.vector_store %arg4[%c0_15, %c0_16, %c0_17], %37 {strides = array<i32>} : memref<1x3x128xf32, #tpu.memory_space<vmem>>, vector<1x1x128xf32>,
    %c0_18 = arith.constant 0 : index
    %c1 = arith.constant 1 : index
    %c0_19 = arith.constant 0 : index
    %38 = vector.load %arg4[%c0_18, %c1, %c0_19] : memref<1x3x128xf32, #tpu.memory_space<vmem>>, vector<1x1x128xf32>
    %39 = vector.shape_cast %38 : vector<1x1x128xf32> to vector<1x128xf32>
    %40 = arith.extui %29 : vector<1x128xi1> to vector<1x128xi32>
    %41 = arith.sitofp %40 : vector<1x128xi32> to vector<1x128xf32>
    %42 = arith.addf %39, %41 : vector<1x128xf32>
    %c0_20 = arith.constant 0 : index
    %c1_21 = arith.constant 1 : index
    %c0_22 = arith.constant 0 : index
    %43 = vector.load %arg4[%c0_20, %c1_21, %c0_22] : memref<1x3x128xf32, #tpu.memory_space<vmem>>, vector<1x1x128xf32>
    %44 = vector.shape_cast %43 : vector<1x1x128xf32> to vector<1x128xf32>
    %45 = vector.shape_cast %42 : vector<1x128xf32> to vector<1x1x128xf32>
    tpu.vector_store %arg4[%c0_20, %c1_21, %c0_22], %45 {strides = array<i32>} : memref<1x3x128xf32, #tpu.memory_space<vmem>>, vector<1x1x128xf32>,
    %c0_23 = arith.constant 0 : index
    %c2 = arith.constant 2 : index
    %c0_24 = arith.constant 0 : index
    %46 = vector.load %arg4[%c0_23, %c2, %c0_24] : memref<1x3x128xf32, #tpu.memory_space<vmem>>, vector<1x1x128xf32>
    %47 = vector.shape_cast %46 : vector<1x1x128xf32> to vector<1x128xf32>
    %48 = arith.extui %24 : vector<1x128xi1> to vector<1x128xi32>
    %49 = arith.sitofp %48 : vector<1x128xi32> to vector<1x128xf32>
    %50 = arith.addf %47, %49 : vector<1x128xf32>
    %c0_25 = arith.constant 0 : index
    %c2_26 = arith.constant 2 : index
    %c0_27 = arith.constant 0 : index
    %51 = vector.load %arg4[%c0_25, %c2_26, %c0_27] : memref<1x3x128xf32, #tpu.memory_space<vmem>>, vector<1x1x128xf32>
    %52 = vector.shape_cast %51 : vector<1x1x128xf32> to vector<1x128xf32>
    %53 = vector.shape_cast %50 : vector<1x128xf32> to vector<1x1x128xf32>
    tpu.vector_store %arg4[%c0_25, %c2_26, %c0_27], %53 {strides = array<i32>} : memref<1x3x128xf32, #tpu.memory_space<vmem>>, vector<1x1x128xf32>,
    return
  }
  func.func @transform_0(%arg0: i32, %arg1: i32) -> (i32, i32, i32) {
    %c0_i32 = arith.constant 0 : i32
    %c0_i32_0 = arith.constant 0 : i32
    return %arg0, %c0_i32, %arg1 : i32, i32, i32
  }
  func.func @transform_1(%arg0: i32, %arg1: i32) -> (i32, i32, i32) {
    %c0_i32 = arith.constant 0 : i32
    %c0_i32_0 = arith.constant 0 : i32
    return %arg0, %c0_i32, %arg1 : i32, i32, i32
  }
  func.func @transform_2(%arg0: i32, %arg1: i32) -> (i32, i32, i32) {
    %c0_i32 = arith.constant 0 : i32
    %c0_i32_0 = arith.constant 0 : i32
    %c0_i32_1 = arith.constant 0 : i32
    return %arg0, %c0_i32, %c0_i32_0 : i32, i32, i32
  }
}

module attributes {stable_mosaic.version = 11 : i64} {
  func.func @_ce_loss_kernel(%arg0: i32, %arg1: i32, %arg2: memref<1x4x128xf32, #tpu.memory_space<vmem>>, %arg3: memref<1x1x128xi32, #tpu.memory_space<vmem>>, %arg4: memref<1x1x128xf32, #tpu.memory_space<vmem>>) attributes {dimension_semantics = [#tpu.dimension_semantics<parallel>, #tpu.dimension_semantics<parallel>], iteration_bounds = array<i64: 2, 2>, scalar_prefetch = 0 : i64, scratch_operands = 0 : i64, tpu.core_type = #tpu.core_type<tc>, window_params = [{transform_indices = @transform_0, window_bounds = array<i64: 1, 4, 128>}, {transform_indices = @transform_1, window_bounds = array<i64: 1, 1, 128>}, {transform_indices = @transform_2, window_bounds = array<i64: 1, 1, 128>}]} {
    %c0 = arith.constant 0 : index
    %c0_0 = arith.constant 0 : index
    %c0_1 = arith.constant 0 : index
    %0 = vector.load %arg2[%c0, %c0_0, %c0_1] : memref<1x4x128xf32, #tpu.memory_space<vmem>>, vector<1x4x128xf32>
    %1 = vector.shape_cast %0 : vector<1x4x128xf32> to vector<4x128xf32>
    %c0_2 = arith.constant 0 : index
    %c0_3 = arith.constant 0 : index
    %c0_4 = arith.constant 0 : index
    %2 = vector.load %arg3[%c0_2, %c0_3, %c0_4] : memref<1x1x128xi32, #tpu.memory_space<vmem>>, vector<1x1x128xi32>
    %3 = vector.shape_cast %2 : vector<1x1x128xi32> to vector<1x128xi32>
    %cst = arith.constant dense<0xFF800000> : vector<128xf32>
    %4 = vector.multi_reduction <maximumf>, %1, %cst [0] : vector<4x128xf32> to vector<128xf32>
    %5 = vector.shape_cast %4 : vector<128xf32> to vector<1x128xf32>
    %6 = vector.broadcast %5 : vector<1x128xf32> to vector<4x128xf32>
    %7 = arith.subf %1, %6 : vector<4x128xf32>
    %8 = math.exp %7 : vector<4x128xf32>
    %cst_5 = arith.constant dense<0.000000e+00> : vector<128xf32>
    %9 = vector.multi_reduction <add>, %8, %cst_5 [0] : vector<4x128xf32> to vector<128xf32>
    %10 = vector.shape_cast %9 : vector<128xf32> to vector<1x128xf32>
    %11 = math.log %10 : vector<1x128xf32>
    %12 = arith.addf %5, %11 : vector<1x128xf32>
    %13 = tpu.iota {dimensions = array<i32: 0>} : vector<4x128xi32>
    %14 = vector.broadcast %3 : vector<1x128xi32> to vector<4x128xi32>
    %15 = arith.cmpi eq, %13, %14 : vector<4x128xi32>
    %cst_6 = arith.constant 0.000000e+00 : f32
    %16 = vector.broadcast %cst_6 : f32 to vector<4x128xf32>
    %17 = arith.select %15, %1, %16 : vector<4x128xi1>, vector<4x128xf32>
    %cst_7 = arith.constant dense<0.000000e+00> : vector<128xf32>
    %18 = vector.multi_reduction <add>, %17, %cst_7 [0] : vector<4x128xf32> to vector<128xf32>
    %19 = vector.shape_cast %18 : vector<128xf32> to vector<1x128xf32>
    %c255_i32 = arith.constant 255 : i32
    %20 = vector.broadcast %c255_i32 : i32 to vector<1x128xi32>
    %21 = arith.cmpi ne, %3, %20 : vector<1x128xi32>
    %22 = arith.subf %12, %19 : vector<1x128xf32>
    %cst_8 = arith.constant 0xFF800000 : f32
    %23 = vector.broadcast %cst_8 : f32 to vector<1x128xf32>
    %24 = arith.select %21, %22, %23 : vector<1x128xi1>, vector<1x128xf32>
    %c0_9 = arith.constant 0 : index
    %c0_10 = arith.constant 0 : index
    %c0_11 = arith.constant 0 : index
    %25 = vector.load %arg4[%c0_9, %c0_10, %c0_11] : memref<1x1x128xf32, #tpu.memory_space<vmem>>, vector<1x1x128xf32>
    %26 = vector.shape_cast %25 : vector<1x1x128xf32> to vector<1x128xf32>
    %27 = vector.shape_cast %24 : vector<1x128xf32> to vector<1x1x128xf32>
    tpu.vector_store %arg4[%c0_9, %c0_10, %c0_11], %27 {strides = array<i32>} : memref<1x1x128xf32, #tpu.memory_space<vmem>>, vector<1x1x128xf32>,
    return
  }
  func.func @transform_0(%arg0: i32, %arg1: i32) -> (i32, i32, i32) {
    %c0_i32 = arith.constant 0 : i32
    %c0_i32_0 = arith.constant 0 : i32
    return %arg0, %c0_i32, %arg1 : i32, i32, i32
  }
  func.func @transform_1(%arg0: i32, %arg1: i32) -> (i32, i32, i32) {
    %c0_i32 = arith.constant 0 : i32
    %c0_i32_0 = arith.constant 0 : i32
    return %arg0, %c0_i32, %arg1 : i32, i32, i32
  }
  func.func @transform_2(%arg0: i32, %arg1: i32) -> (i32, i32, i32) {
    %c0_i32 = arith.constant 0 : i32
    %c0_i32_0 = arith.constant 0 : i32
    return %arg0, %c0_i32, %arg1 : i32, i32, i32
  }
}

</mosaic_0001>

<llo_original>
// kernel: ohem_ce_loss.1
$region0: #{ohem_ce_loss.1}
  #allocation0 [shape = 'u32[]', space=smem, size = 0x4, offset = 0x4, fixed_abs, tag = 'smem constant byte address 0x4 - core index']
  #allocation1 [shape = 'u32[144,128]{1,0:T(1,128)}', space=vmem, size = 0x12000, scoped, tag = 'internal scratch']
  %s0 = inlined_call_operand.vmem [shape: f32[2,4,256], index: 0, kind: input, shape index: {}]
  %s1 = inlined_call_operand.vmem [shape: s32[2,1,256], index: 1, kind: input, shape index: {}]
  %s2 = inlined_call_operand.vmem [shape: f32[2,3,128], index: 2, kind: output, shape index: {}]
  %s3 = sld [smem:[#allocation0]]
  $region45: #{ohem_ce_loss.1} parent=0
    _
  %s5 = ssub.s32 1, %s3
  %s6 = scalar_select 0, %s5, %s3
  loop: start=0, step=1, limit=6
  $region2: #{ohem_ce_loss.1} parent=0 // loop_pre_header
    _
  $region3: #{ohem_ce_loss.1} parent=0 // loop_header
    %s8 = sphi 0, %s12
    %p9 = scmp.ge.s32.totalorder %s8, 6
    %s15 = sphi 0, %s27
    %s16 = sphi 0, %s23
    %s17 = sphi 0, %s15
    %s18 = sphi 0, %s16
    %s19 = sphi 0, %s17
    %s20 = sphi 0, %s18
    %s32 = sphi 0, %s34
    %s35 = sphi 0, %s32
    %s36 = sphi 0, %s35
    %s52 = sphi 0, %s36
    %s60 = sphi 0, %s62
    %s63 = sphi 0, %s60
    %s64 = sphi 0, %s63
    %s80 = sphi 0, %s64
    %s86 = sphi 0, %s88
    %s89 = sphi 0, %s86
    %s90 = sphi 0, %s89
    %s106 = sphi 0, %s90
  $region4: #{ohem_ce_loss.1} parent=0 // loop_header_branch
    %11 = sbr.rel (%p9) target = $region8
  $region5: #{ohem_ce_loss.1} parent=0 // loop_body
    %s13 = ssub.s32 %s8, 1
    %s14 = ssub.s32 %s8, 2
    %s21 = sadd.s32 1, %s16
    %p22 = scmp.ge.s32.totalorder %s21, 2
    %s23 = scalar_select %p22, 0, %s21
    %s24 = sadd.s32 1, %s15
    %s25 = scalar_select %p22, %s24, %s15
    %p26 = scmp.ge.s32.totalorder %s25, 2
    %s27 = scalar_select %p26, 0, %s25
    %s28 = ssub.s32 %s15, %s27
    %s29 = ssub.s32 %s16, %s23
    %s30 = sor.u32 %s28, %s29
    %p31 = scmp.eq.s32.totalorder %s30, 0
    %s33 = sadd.s32 %s32, 1
    %s34 = scalar_select %p31, %s32, %s33
    %p37 = pneg %p31
    %p38 = scmp.eq.s32.totalorder %s8, 3
    %p39 = por %p37, %p38
    %p40 = scmp.ne.s32.totalorder %s32, %s35
    %p41 = scmp.eq.s32.totalorder %s8, 0
    %p42 = por %p40, %p41
    %p43 = scmp.ne.s32.totalorder %s32, %s35
    %p44 = scmp.eq.s32.totalorder %s13, 3
    %p45 = por %p43, %p44
    %p46 = scmp.ne.s32.totalorder %s35, %s36
    %p47 = scmp.eq.s32.totalorder %s13, 0
    %p48 = por %p46, %p47
    %p49 = scmp.ne.s32.totalorder %s35, %s36
    %p50 = scmp.eq.s32.totalorder %s14, 3
    %p51 = por %p49, %p50
    %p53 = scmp.ne.s32.totalorder %s36, %s52
    %p54 = scmp.eq.s32.totalorder %s14, 0
    %p55 = por %p53, %p54
    %s56 = ssub.s32 %s15, %s27
    %s57 = ssub.s32 %s16, %s23
    %s58 = sor.u32 %s56, %s57
    %p59 = scmp.eq.s32.totalorder %s58, 0
    %s61 = sadd.s32 %s60, 1
    %s62 = scalar_select %p59, %s60, %s61
    %p65 = pneg %p59
    %p66 = scmp.eq.s32.totalorder %s8, 3
    %p67 = por %p65, %p66
    %p68 = scmp.ne.s32.totalorder %s60, %s63
    %p69 = scmp.eq.s32.totalorder %s8, 0
    %p70 = por %p68, %p69
    %p71 = scmp.ne.s32.totalorder %s60, %s63
    %p72 = scmp.eq.s32.totalorder %s13, 3
    %p73 = por %p71, %p72
    %p74 = scmp.ne.s32.totalorder %s63, %s64
    %p75 = scmp.eq.s32.totalorder %s13, 0
    %p76 = por %p74, %p75
    %p77 = scmp.ne.s32.totalorder %s63, %s64
    %p78 = scmp.eq.s32.totalorder %s14, 3
    %p79 = por %p77, %p78
    %p81 = scmp.ne.s32.totalorder %s64, %s80
    %p82 = scmp.eq.s32.totalorder %s14, 0
    %p83 = por %p81, %p82
    %s84 = ssub.s32 %s15, %s27
    %p85 = scmp.eq.s32.totalorder %s84, 0
    %s87 = sadd.s32 %s86, 1
    %s88 = scalar_select %p85, %s86, %s87
    %p91 = pneg %p85
    %p92 = scmp.eq.s32.totalorder %s8, 3
    %p93 = por %p91, %p92
    %p94 = scmp.ne.s32.totalorder %s86, %s89
    %p95 = scmp.eq.s32.totalorder %s8, 0
    %p96 = por %p94, %p95
    %p97 = scmp.ne.s32.totalorder %s86, %s89
    %p98 = scmp.eq.s32.totalorder %s13, 3
    %p99 = por %p97, %p98
    %p100 = scmp.ne.s32.totalorder %s89, %s90
    %p101 = scmp.eq.s32.totalorder %s13, 0
    %p102 = por %p100, %p101
    %p103 = scmp.ne.s32.totalorder %s89, %s90
    %p104 = scmp.eq.s32.totalorder %s14, 3
    %p105 = por %p103, %p104
    %p107 = scmp.ne.s32.totalorder %s90, %s106
    %p108 = scmp.eq.s32.totalorder %s14, 0
    %p109 = por %p107, %p108
    %p110 = scmp.le.s32.totalorder 1, %s8
    %p111 = scmp.lt.s32.totalorder %s8, 5
    %p112 = pnand %p110, %p111
    %p113 = pneg %p112
    // Predicated region
    $region9: #{ohem_ce_loss.1} parent=5 // pred_check
      _
    $region10: #{ohem_ce_loss.1} parent=5 // pred_check_branch
      %115 = sbr.rel (%p112) target = $region12
    $region11: #{ohem_ce_loss.1} parent=5 // pred_region
      %s116 = ssub.s32 %s8, 1
    $region12: #{ohem_ce_loss.1} parent=5 // pred_fallthru
      _
    %p117 = scmp.lt.s32.totalorder %s8, 4
    // Predicated region
    $region13: #{ohem_ce_loss.1} parent=5 // pred_check
      %p118 = pneg %p117
    $region14: #{ohem_ce_loss.1} parent=5 // pred_check_branch
      %120 = sbr.rel (%p118) target = $region16
    $region15: #{ohem_ce_loss.1} parent=5 // pred_region
      // Predicated region
      $region17: #{ohem_ce_loss.1} parent=15 // pred_check
        %p121 = pneg %p42
      $region18: #{ohem_ce_loss.1} parent=15 // pred_check_branch
        %123 = sbr.rel (%p121) target = $region20
      $region19: #{ohem_ce_loss.1} parent=15 // pred_region
        %p124 = scmp.lt.s32.totalorder %s15, 1
        %s125 = scalar_select %p124, %s15, 1
        %p126 = scmp.lt.s32.totalorder %s16, 1
        %s127 = scalar_select %p126, %s16, 1
        %s128 = smul.addr %s125, 2
        %s129 = sadd.s32 %s127, %s128
        %s130 = smul.addr %s129, 4
        %s131 = scalar_lea.vmem %s0, %s130
      $region20: #{ohem_ce_loss.1} parent=15 // pred_fallthru
        _
      // Predicated region
      $region21: #{ohem_ce_loss.1} parent=15 // pred_check
        %p132 = pneg %p70
      $region22: #{ohem_ce_loss.1} parent=15 // pred_check_branch
        %134 = sbr.rel (%p132) target = $region24
      $region23: #{ohem_ce_loss.1} parent=15 // pred_region
        %p135 = scmp.lt.s32.totalorder %s15, 1
        %s136 = scalar_select %p135, %s15, 1
        %p137 = scmp.lt.s32.totalorder %s16, 1
        %s138 = scalar_select %p137, %s16, 1
        %s139 = smul.addr %s136, 2
        %s140 = sadd.s32 %s138, %s139
        %s141 = scalar_lea.vmem %s1, %s140
      $region24: #{ohem_ce_loss.1} parent=15 // pred_fallthru
        _
    $region16: #{ohem_ce_loss.1} parent=5 // pred_fallthru
      _
    %p142 = scmp.le.s32.totalorder 1, %s8
    %p143 = scmp.lt.s32.totalorder %s8, 5
    %p144 = pnand %p142, %p143
    %p145 = pneg %p144
    // Predicated region
    $region25: #{ohem_ce_loss.1} parent=5 // pred_check
      _
    $region26: #{ohem_ce_loss.1} parent=5 // pred_check_branch
      %147 = sbr.rel (%p144) target = $region28
    $region27: #{ohem_ce_loss.1} parent=5 // pred_region
      %s148 = ssub.s32 %s8, 1
      %p149 = scmp.lt.s32.totalorder %s17, 1
      %s150 = scalar_select %p149, %s17, 1
      %p151 = scmp.lt.s32.totalorder %s18, 1
      %s152 = scalar_select %p151, %s18, 1
      %s153 = smul.addr %s150, 2
      %s154 = sadd.s32 %s152, %s153
      %s155 = smul.addr %s154, 4
      %s156 = scalar_lea.vmem %s0, %s155
      %p157 = pneg %p48
      %p158 = pneg %p45
      %p159 = scmp.lt.s32.totalorder %s17, 1
      %s160 = scalar_select %p159, %s17, 1
      %p161 = scmp.lt.s32.totalorder %s18, 1
      %s162 = scalar_select %p161, %s18, 1
      %s163 = smul.addr %s160, 2
      %s164 = sadd.s32 %s162, %s163
      %s165 = scalar_lea.vmem %s1, %s164
      %p166 = pneg %p76
      %p167 = pneg %p73
      %p168 = pneg %p102
      %p169 = pneg %p99
      %p170 = scmp.lt.s32.totalorder %s17, 1
      %s171 = scalar_select %p170, %s17, 1
      %s172 = smul.addr %s171, 4
      %s173 = scalar_lea.vmem %s2, %s172
      %p174 = scmp.lt.s32.totalorder %s17, 1
      %s175 = scalar_select %p174, %s17, 1
      %p176 = scmp.lt.s32.totalorder %s18, 1
      %s177 = scalar_select %p176, %s18, 1
      %s178 = smul.addr %s175, 2
      %s179 = sadd.s32 %s177, %s178
      %s180 = smul.addr %s179, 4
      %s181 = scalar_lea.vmem %s0, %s180
      %p182 = scmp.lt.s32.totalorder %s17, 1
      %s183 = scalar_select %p182, %s17, 1
      %p184 = scmp.lt.s32.totalorder %s18, 1
      %s185 = scalar_select %p184, %s18, 1
      %s186 = smul.addr %s183, 2
      %s187 = sadd.s32 %s185, %s186
      %s188 = scalar_lea.vmem %s1, %s187
      %p189 = scmp.lt.s32.totalorder %s17, 1
      %s190 = scalar_select %p189, %s17, 1
      %s191 = smul.addr %s190, 4
      %s192 = scalar_lea.vmem %s2, %s191
      %p193 = scmp.eq.s32.totalorder %s18, 0
      // Predicated region
      $region29: #{ohem_ce_loss.1} parent=27 // pred_check
        %p194 = pneg %p193
      $region30: #{ohem_ce_loss.1} parent=27 // pred_check_branch
        %196 = sbr.rel (%p194) target = $region32
      $region31: #{ohem_ce_loss.1} parent=27 // pred_region
        %197 = vst [vmem:[%s192] sm:$0x7] 0.0
      $region32: #{ohem_ce_loss.1} parent=27 // pred_fallthru
        _
      %v198 = vld [vmem:[%s181] sm:$0xf]
      %v199 = vld [vmem:[%s188] sm:$0x1]
      %vm200 = vcmask 1043456
      %v201 = vsel %vm200, %v198, -inf
      %v202 = vrot.slane %v201, 4
      %v203 = vmax.f32 %v201, %v202
      %v204 = vrot.slane %v203, 2
      %v205 = vmax.f32 %v203, %v204
      %v206 = vrot.slane %v205, 1
      %v207 = vmax.f32 %v205, %v206
      %v208 = vsub.f32 %v198, %v207
      %v209 = vmul.f32 %v208, 1.442695
      %v210 = vpow.pop %v209
      %v211 = vsel %vm200, %v210, 0.0
      %v212 = vrot.slane %v211, 4
      %v213 = vadd.f32 %v211, %v212
      %v214 = vrot.slane %v213, 2
      %v215 = vadd.f32 %v213, %v214
      %v216 = vrot.slane %v215, 1
      %v217 = vadd.f32 %v215, %v216
      %v218 = vlog2.pop %v217
      %v219 = vmul.f32 %v218, 0.6931472
      %v220 = vadd.f32 %v207, %v219
      %v221 = vlaneseq
      %v222 = vshrl.u32 %v221, 7
      %v223 = vlaneseq
      %v224 = vshrl.u32 %v223, 7
      %v225 = vsub.s32 0, %v224
      %v226 = vrot.slane %v199, %v225
      %vm227 = vcmp.eq.s32.totalorder %v222, %v226
      %v228 = vsel %vm227, %v198, 0.0
      %v229 = vsel %vm200, %v228, 0.0
      %v230 = vrot.slane %v229, 4
      %v231 = vadd.f32 %v229, %v230
      %v232 = vrot.slane %v231, 2
      %v233 = vadd.f32 %v231, %v232
      %v234 = vrot.slane %v233, 1
      %v235 = vadd.f32 %v233, %v234
      %vm236 = vcmp.ne.s32.totalorder %v199, 255
      %v237 = vsub.f32 %v220, %v235
      %v238 = vsel %vm236, %v237, -inf
      %vm239 = vcmp.ge.f32.partialorder %v238, 0.35667494
      %v240 = vld [vmem:[%s192] sm:$0x1]
      %v241 = vsel %vm239, %v238, 0.0
      %v242 = vadd.f32 %v240, %v241
      %243 = vst [vmem:[%s192] sm:$0x1] %v242
      %v244 = vld [vmem:[%s192 + $0x1] sm:$0x1]
      %v245 = vsel %vm239, 1, 0
      %v246 = vcvt.s32.f32 %v245
      %v247 = vadd.f32 %v244, %v246
      %248 = vst [vmem:[%s192 + $0x1] sm:$0x1] %v247
      %v249 = vld [vmem:[%s192 + $0x2] sm:$0x1]
      %v250 = vsel %vm236, 1, 0
      %v251 = vcvt.s32.f32 %v250
      %v252 = vadd.f32 %v249, %v251
      %253 = vst [vmem:[%s192 + $0x2] sm:$0x1] %v252
      %p254 = scmp.lt.s32.totalorder %s17, 1
      %s255 = scalar_select %p254, %s17, 1
      %s256 = smul.addr %s255, 4
      %s257 = scalar_lea.vmem %s2, %s256
      // Predicated region
      $region33: #{ohem_ce_loss.1} parent=27 // pred_check
        %p258 = pneg %p99
      $region34: #{ohem_ce_loss.1} parent=27 // pred_check_branch
        %260 = sbr.rel (%p258) target = $region36
      $region35: #{ohem_ce_loss.1} parent=27 // pred_region
        _
      $region36: #{ohem_ce_loss.1} parent=27 // pred_fallthru
        _
    $region28: #{ohem_ce_loss.1} parent=5 // pred_fallthru
      _
    %p261 = scmp.le.s32.totalorder 2, %s8
    // Predicated region
    $region37: #{ohem_ce_loss.1} parent=5 // pred_check
      %p262 = pneg %p261
    $region38: #{ohem_ce_loss.1} parent=5 // pred_check_branch
      %264 = sbr.rel (%p262) target = $region40
    $region39: #{ohem_ce_loss.1} parent=5 // pred_region
      %s265 = ssub.s32 %s8, 2
      // Predicated region
      $region41: #{ohem_ce_loss.1} parent=39 // pred_check
        %p266 = pneg %p105
      $region42: #{ohem_ce_loss.1} parent=39 // pred_check_branch
        %268 = sbr.rel (%p266) target = $region44
      $region43: #{ohem_ce_loss.1} parent=39 // pred_region
        %p269 = scmp.lt.s32.totalorder %s19, 1
        %s270 = scalar_select %p269, %s19, 1
        %s271 = smul.addr %s270, 4
        %s272 = scalar_lea.vmem %s2, %s271
      $region44: #{ohem_ce_loss.1} parent=39 // pred_fallthru
        _
    $region40: #{ohem_ce_loss.1} parent=5 // pred_fallthru
      _
  $region6: #{ohem_ce_loss.1} parent=0 // loop_footer
    %s12 = sadd.s32 1, %s8
  $region7: #{ohem_ce_loss.1} parent=0 // loop_footer_branch
    %7 = sbr.rel target = $region3
  $region8: #{ohem_ce_loss.1} parent=0 // loop_exit
    _

// kernel: branch_0_fun.1
$region0: #{branch_0_fun.1}
  #allocation0 [shape = 'u32[]', space=smem, size = 0x4, offset = 0x4, fixed_abs, tag = 'smem constant byte address 0x4 - core index']
  #allocation1 [shape = 'u32[144,128]{1,0:T(1,128)}', space=vmem, size = 0x12000, scoped, tag = 'internal scratch']
  %s0 = inlined_call_operand.vmem [shape: f32[2,4,256], index: 0, kind: input, shape index: {}]
  %s1 = inlined_call_operand.vmem [shape: s32[2,1,256], index: 1, kind: input, shape index: {}]
  %s2 = inlined_call_operand.vmem [shape: f32[2,1,256], index: 2, kind: output, shape index: {}]
  %s3 = sld [smem:[#allocation0]]
  $region41: #{branch_0_fun.1} parent=0
    _
  %s5 = ssub.s32 1, %s3
  %s6 = scalar_select 0, %s5, %s3
  loop: start=0, step=1, limit=6
  $region2: #{branch_0_fun.1} parent=0 // loop_pre_header
    _
  $region3: #{branch_0_fun.1} parent=0 // loop_header
    %s8 = sphi 0, %s12
    %p9 = scmp.ge.s32.totalorder %s8, 6
    %s15 = sphi 0, %s27
    %s16 = sphi 0, %s23
    %s17 = sphi 0, %s15
    %s18 = sphi 0, %s16
    %s19 = sphi 0, %s17
    %s20 = sphi 0, %s18
    %s32 = sphi 0, %s34
    %s35 = sphi 0, %s32
    %s36 = sphi 0, %s35
    %s52 = sphi 0, %s36
    %s60 = sphi 0, %s62
    %s63 = sphi 0, %s60
    %s64 = sphi 0, %s63
    %s80 = sphi 0, %s64
    %s88 = sphi 0, %s90
    %s91 = sphi 0, %s88
    %s92 = sphi 0, %s91
    %s108 = sphi 0, %s92
  $region4: #{branch_0_fun.1} parent=0 // loop_header_branch
    %11 = sbr.rel (%p9) target = $region8
  $region5: #{branch_0_fun.1} parent=0 // loop_body
    %s13 = ssub.s32 %s8, 1
    %s14 = ssub.s32 %s8, 2
    %s21 = sadd.s32 1, %s16
    %p22 = scmp.ge.s32.totalorder %s21, 2
    %s23 = scalar_select %p22, 0, %s21
    %s24 = sadd.s32 1, %s15
    %s25 = scalar_select %p22, %s24, %s15
    %p26 = scmp.ge.s32.totalorder %s25, 2
    %s27 = scalar_select %p26, 0, %s25
    %s28 = ssub.s32 %s15, %s27
    %s29 = ssub.s32 %s16, %s23
    %s30 = sor.u32 %s28, %s29
    %p31 = scmp.eq.s32.totalorder %s30, 0
    %s33 = sadd.s32 %s32, 1
    %s34 = scalar_select %p31, %s32, %s33
    %p37 = pneg %p31
    %p38 = scmp.eq.s32.totalorder %s8, 3
    %p39 = por %p37, %p38
    %p40 = scmp.ne.s32.totalorder %s32, %s35
    %p41 = scmp.eq.s32.totalorder %s8, 0
    %p42 = por %p40, %p41
    %p43 = scmp.ne.s32.totalorder %s32, %s35
    %p44 = scmp.eq.s32.totalorder %s13, 3
    %p45 = por %p43, %p44
    %p46 = scmp.ne.s32.totalorder %s35, %s36
    %p47 = scmp.eq.s32.totalorder %s13, 0
    %p48 = por %p46, %p47
    %p49 = scmp.ne.s32.totalorder %s35, %s36
    %p50 = scmp.eq.s32.totalorder %s14, 3
    %p51 = por %p49, %p50
    %p53 = scmp.ne.s32.totalorder %s36, %s52
    %p54 = scmp.eq.s32.totalorder %s14, 0
    %p55 = por %p53, %p54
    %s56 = ssub.s32 %s15, %s27
    %s57 = ssub.s32 %s16, %s23
    %s58 = sor.u32 %s56, %s57
    %p59 = scmp.eq.s32.totalorder %s58, 0
    %s61 = sadd.s32 %s60, 1
    %s62 = scalar_select %p59, %s60, %s61
    %p65 = pneg %p59
    %p66 = scmp.eq.s32.totalorder %s8, 3
    %p67 = por %p65, %p66
    %p68 = scmp.ne.s32.totalorder %s60, %s63
    %p69 = scmp.eq.s32.totalorder %s8, 0
    %p70 = por %p68, %p69
    %p71 = scmp.ne.s32.totalorder %s60, %s63
    %p72 = scmp.eq.s32.totalorder %s13, 3
    %p73 = por %p71, %p72
    %p74 = scmp.ne.s32.totalorder %s63, %s64
    %p75 = scmp.eq.s32.totalorder %s13, 0
    %p76 = por %p74, %p75
    %p77 = scmp.ne.s32.totalorder %s63, %s64
    %p78 = scmp.eq.s32.totalorder %s14, 3
    %p79 = por %p77, %p78
    %p81 = scmp.ne.s32.totalorder %s64, %s80
    %p82 = scmp.eq.s32.totalorder %s14, 0
    %p83 = por %p81, %p82
    %s84 = ssub.s32 %s15, %s27
    %s85 = ssub.s32 %s16, %s23
    %s86 = sor.u32 %s84, %s85
    %p87 = scmp.eq.s32.totalorder %s86, 0
    %s89 = sadd.s32 %s88, 1
    %s90 = scalar_select %p87, %s88, %s89
    %p93 = pneg %p87
    %p94 = scmp.eq.s32.totalorder %s8, 3
    %p95 = por %p93, %p94
    %p96 = scmp.ne.s32.totalorder %s88, %s91
    %p97 = scmp.eq.s32.totalorder %s8, 0
    %p98 = por %p96, %p97
    %p99 = scmp.ne.s32.totalorder %s88, %s91
    %p100 = scmp.eq.s32.totalorder %s13, 3
    %p101 = por %p99, %p100
    %p102 = scmp.ne.s32.totalorder %s91, %s92
    %p103 = scmp.eq.s32.totalorder %s13, 0
    %p104 = por %p102, %p103
    %p105 = scmp.ne.s32.totalorder %s91, %s92
    %p106 = scmp.eq.s32.totalorder %s14, 3
    %p107 = por %p105, %p106
    %p109 = scmp.ne.s32.totalorder %s92, %s108
    %p110 = scmp.eq.s32.totalorder %s14, 0
    %p111 = por %p109, %p110
    %p112 = scmp.le.s32.totalorder 1, %s8
    %p113 = scmp.lt.s32.totalorder %s8, 5
    %p114 = pnand %p112, %p113
    %p115 = pneg %p114
    // Predicated region
    $region9: #{branch_0_fun.1} parent=5 // pred_check
      _
    $region10: #{branch_0_fun.1} parent=5 // pred_check_branch
      %117 = sbr.rel (%p114) target = $region12
    $region11: #{branch_0_fun.1} parent=5 // pred_region
      %s118 = ssub.s32 %s8, 1
    $region12: #{branch_0_fun.1} parent=5 // pred_fallthru
      _
    %p119 = scmp.lt.s32.totalorder %s8, 4
    // Predicated region
    $region13: #{branch_0_fun.1} parent=5 // pred_check
      %p120 = pneg %p119
    $region14: #{branch_0_fun.1} parent=5 // pred_check_branch
      %122 = sbr.rel (%p120) target = $region16
    $region15: #{branch_0_fun.1} parent=5 // pred_region
      // Predicated region
      $region17: #{branch_0_fun.1} parent=15 // pred_check
        %p123 = pneg %p42
      $region18: #{branch_0_fun.1} parent=15 // pred_check_branch
        %125 = sbr.rel (%p123) target = $region20
      $region19: #{branch_0_fun.1} parent=15 // pred_region
        %p126 = scmp.lt.s32.totalorder %s15, 1
        %s127 = scalar_select %p126, %s15, 1
        %p128 = scmp.lt.s32.totalorder %s16, 1
        %s129 = scalar_select %p128, %s16, 1
        %s130 = smul.addr %s127, 2
        %s131 = sadd.s32 %s129, %s130
        %s132 = smul.addr %s131, 4
        %s133 = scalar_lea.vmem %s0, %s132
      $region20: #{branch_0_fun.1} parent=15 // pred_fallthru
        _
      // Predicated region
      $region21: #{branch_0_fun.1} parent=15 // pred_check
        %p134 = pneg %p70
      $region22: #{branch_0_fun.1} parent=15 // pred_check_branch
        %136 = sbr.rel (%p134) target = $region24
      $region23: #{branch_0_fun.1} parent=15 // pred_region
        %p137 = scmp.lt.s32.totalorder %s15, 1
        %s138 = scalar_select %p137, %s15, 1
        %p139 = scmp.lt.s32.totalorder %s16, 1
        %s140 = scalar_select %p139, %s16, 1
        %s141 = smul.addr %s138, 2
        %s142 = sadd.s32 %s140, %s141
        %s143 = scalar_lea.vmem %s1, %s142
      $region24: #{branch_0_fun.1} parent=15 // pred_fallthru
        _
    $region16: #{branch_0_fun.1} parent=5 // pred_fallthru
      _
    %p144 = scmp.le.s32.totalorder 1, %s8
    %p145 = scmp.lt.s32.totalorder %s8, 5
    %p146 = pnand %p144, %p145
    %p147 = pneg %p146
    // Predicated region
    $region25: #{branch_0_fun.1} parent=5 // pred_check
      _
    $region26: #{branch_0_fun.1} parent=5 // pred_check_branch
      %149 = sbr.rel (%p146) target = $region28
    $region27: #{branch_0_fun.1} parent=5 // pred_region
      %s150 = ssub.s32 %s8, 1
      %p151 = scmp.lt.s32.totalorder %s17, 1
      %s152 = scalar_select %p151, %s17, 1
      %p153 = scmp.lt.s32.totalorder %s18, 1
      %s154 = scalar_select %p153, %s18, 1
      %s155 = smul.addr %s152, 2
      %s156 = sadd.s32 %s154, %s155
      %s157 = smul.addr %s156, 4
      %s158 = scalar_lea.vmem %s0, %s157
      %p159 = pneg %p48
      %p160 = pneg %p45
      %p161 = scmp.lt.s32.totalorder %s17, 1
      %s162 = scalar_select %p161, %s17, 1
      %p163 = scmp.lt.s32.totalorder %s18, 1
      %s164 = scalar_select %p163, %s18, 1
      %s165 = smul.addr %s162, 2
      %s166 = sadd.s32 %s164, %s165
      %s167 = scalar_lea.vmem %s1, %s166
      %p168 = pneg %p76
      %p169 = pneg %p73
      %p170 = pneg %p104
      %p171 = pneg %p101
      %p172 = scmp.lt.s32.totalorder %s17, 1
      %s173 = scalar_select %p172, %s17, 1
      %p174 = scmp.lt.s32.totalorder %s18, 1
      %s175 = scalar_select %p174, %s18, 1
      %s176 = smul.addr %s173, 2
      %s177 = sadd.s32 %s175, %s176
      %s178 = scalar_lea.vmem %s2, %s177
      %p179 = scmp.lt.s32.totalorder %s17, 1
      %s180 = scalar_select %p179, %s17, 1
      %p181 = scmp.lt.s32.totalorder %s18, 1
      %s182 = scalar_select %p181, %s18, 1
      %s183 = smul.addr %s180, 2
      %s184 = sadd.s32 %s182, %s183
      %s185 = smul.addr %s184, 4
      %s186 = scalar_lea.vmem %s0, %s185
      %p187 = scmp.lt.s32.totalorder %s17, 1
      %s188 = scalar_select %p187, %s17, 1
      %p189 = scmp.lt.s32.totalorder %s18, 1
      %s190 = scalar_select %p189, %s18, 1
      %s191 = smul.addr %s188, 2
      %s192 = sadd.s32 %s190, %s191
      %s193 = scalar_lea.vmem %s1, %s192
      %p194 = scmp.lt.s32.totalorder %s17, 1
      %s195 = scalar_select %p194, %s17, 1
      %p196 = scmp.lt.s32.totalorder %s18, 1
      %s197 = scalar_select %p196, %s18, 1
      %s198 = smul.addr %s195, 2
      %s199 = sadd.s32 %s197, %s198
      %s200 = scalar_lea.vmem %s2, %s199
      %v201 = vld [vmem:[%s186] sm:$0xf]
      %v202 = vld [vmem:[%s193] sm:$0x1]
      %vm203 = vcmask 1043456
      %v204 = vsel %vm203, %v201, -inf
      %v205 = vrot.slane %v204, 4
      %v206 = vmax.f32 %v204, %v205
      %v207 = vrot.slane %v206, 2
      %v208 = vmax.f32 %v206, %v207
      %v209 = vrot.slane %v208, 1
      %v210 = vmax.f32 %v208, %v209
      %v211 = vsub.f32 %v201, %v210
      %v212 = vmul.f32 %v211, 1.442695
      %v213 = vpow.pop %v212
      %v214 = vsel %vm203, %v213, 0.0
      %v215 = vrot.slane %v214, 4
      %v216 = vadd.f32 %v214, %v215
      %v217 = vrot.slane %v216, 2
      %v218 = vadd.f32 %v216, %v217
      %v219 = vrot.slane %v218, 1
      %v220 = vadd.f32 %v218, %v219
      %v221 = vlog2.pop %v220
      %v222 = vmul.f32 %v221, 0.6931472
      %v223 = vadd.f32 %v210, %v222
      %v224 = vlaneseq
      %v225 = vshrl.u32 %v224, 7
      %v226 = vlaneseq
      %v227 = vshrl.u32 %v226, 7
      %v228 = vsub.s32 0, %v227
      %v229 = vrot.slane %v202, %v228
      %vm230 = vcmp.eq.s32.totalorder %v225, %v229
      %v231 = vsel %vm230, %v201, 0.0
      %v232 = vsel %vm203, %v231, 0.0
      %v233 = vrot.slane %v232, 4
      %v234 = vadd.f32 %v232, %v233
      %v235 = vrot.slane %v234, 2
      %v236 = vadd.f32 %v234, %v235
      %v237 = vrot.slane %v236, 1
      %v238 = vadd.f32 %v236, %v237
      %vm239 = vcmp.ne.s32.totalorder %v202, 255
      %v240 = vsub.f32 %v223, %v238
      %v241 = vsel %vm239, %v240, -inf
      %242 = vst [vmem:[%s200] sm:$0x1] %v241
      %p243 = scmp.lt.s32.totalorder %s17, 1
      %s244 = scalar_select %p243, %s17, 1
      %p245 = scmp.lt.s32.totalorder %s18, 1
      %s246 = scalar_select %p245, %s18, 1
      %s247 = smul.addr %s244, 2
      %s248 = sadd.s32 %s246, %s247
      %s249 = scalar_lea.vmem %s2, %s248
      // Predicated region
      $region29: #{branch_0_fun.1} parent=27 // pred_check
        %p250 = pneg %p101
      $region30: #{branch_0_fun.1} parent=27 // pred_check_branch
        %252 = sbr.rel (%p250) target = $region32
      $region31: #{branch_0_fun.1} parent=27 // pred_region
        _
      $region32: #{branch_0_fun.1} parent=27 // pred_fallthru
        _
    $region28: #{branch_0_fun.1} parent=5 // pred_fallthru
      _
    %p253 = scmp.le.s32.totalorder 2, %s8
    // Predicated region
    $region33: #{branch_0_fun.1} parent=5 // pred_check
      %p254 = pneg %p253
    $region34: #{branch_0_fun.1} parent=5 // pred_check_branch
      %256 = sbr.rel (%p254) target = $region36
    $region35: #{branch_0_fun.1} parent=5 // pred_region
      %s257 = ssub.s32 %s8, 2
      // Predicated region
      $region37: #{branch_0_fun.1} parent=35 // pred_check
        %p258 = pneg %p107
      $region38: #{branch_0_fun.1} parent=35 // pred_check_branch
        %260 = sbr.rel (%p258) target = $region40
      $region39: #{branch_0_fun.1} parent=35 // pred_region
        %p261 = scmp.lt.s32.totalorder %s19, 1
        %s262 = scalar_select %p261, %s19, 1
        %p263 = scmp.lt.s32.totalorder %s20, 1
        %s264 = scalar_select %p263, %s20, 1
        %s265 = smul.addr %s262, 2
        %s266 = sadd.s32 %s264, %s265
        %s267 = scalar_lea.vmem %s2, %s266
      $region40: #{branch_0_fun.1} parent=35 // pred_fallthru
        _
    $region36: #{branch_0_fun.1} parent=5 // pred_fallthru
      _
  $region6: #{branch_0_fun.1} parent=0 // loop_footer
    %s12 = sadd.s32 1, %s8
  $region7: #{branch_0_fun.1} parent=0 // loop_footer_branch
    %7 = sbr.rel target = $region3
  $region8: #{branch_0_fun.1} parent=0 // loop_exit
    _

</llo_original>
